<compile_context>
chip_gen: v6e
topology: v6e:2x2x1
jax: 0.10.0
libtpu: 0.0.40
codegen_flags: <defaults>
</compile_context>

<pallas_src>
import math

import jax
import jax.numpy as jnp
from jax import lax
from jax.experimental import pallas as pl
from jax.experimental.pallas import tpu as pltpu

_HALF_LOG_2PI = 0.5 * math.log(2.0 * math.pi)


def _ppo_actor_kernel(
    x_ref, eps_ref,
    w1_ref, b1_ref, w2_ref, b2_ref, w3_ref, b3_ref, wmu_ref, bmu_ref,
    sig_ref,
    action_ref,
):
    # Contract over the "in" axis (axis 1) of each torch-layout [out, in]
    # weight: (TILE_B, in) x (out, in) -> (TILE_B, out). No transposes needed.
    dn = (((1,), (1,)), ((), ()))
    x = x_ref[...]                                            # (TILE_B, S)

    h = lax.dot_general(x, w1_ref[...], dn,
                        preferred_element_type=jnp.float32) + b1_ref[...]
    h = jnp.maximum(h, 0.0)
    h = lax.dot_general(h, w2_ref[...], dn,
                        preferred_element_type=jnp.float32) + b2_ref[...]
    h = jnp.maximum(h, 0.0)
    h = lax.dot_general(h, w3_ref[...], dn,
                        preferred_element_type=jnp.float32) + b3_ref[...]
    h = jnp.maximum(h, 0.0)

    mu = lax.dot_general(h, wmu_ref[...], dn,
                         preferred_element_type=jnp.float32) + bmu_ref[...]

    # dist.sample(): reparameterized mu + sig * eps (sig precomputed in wrapper).
    action_ref[...] = mu + sig_ref[...] * eps_ref[...]


def _round_up(x, m):
    return ((x + m - 1) // m) * m


def ppo_actor_forward(state, params, eps, *, tile_b=4096):
    """PPOActor forward (continuous branch).

    state: [B, state_dim] f32
    eps:   [B, A] f32 standard-normal noise (for dist.sample()).
    Returns (action_out, log_prob, entropy), each [B, A] f32.
    """
    B, state_dim = state.shape
    A = params["w_mu"].shape[0]

    # Large tiles amortize per-grid-step overhead; cap at ceil(B/2) (rounded to
    # 128) so the grid has >= 2 steps whenever possible (v7x megacore).
    gran = 128
    tile_b = max(gran, min(tile_b, _round_up(-(-B // 2), gran)))
    b_padded = _round_up(B, tile_b)
    grid = (b_padded // tile_b,)

    state = state.astype(jnp.float32)
    eps = eps.astype(jnp.float32)
    if b_padded != B:
        pad = b_padded - B
        state_p = jnp.pad(state, ((0, pad), (0, 0)))
        eps_p = jnp.pad(eps, ((0, pad), (0, 0)))
    else:
        state_p, eps_p = state, eps

    log_sig = params["log_sig"]                     # (1, A)
    sig = jnp.exp(log_sig)                          # hoisted out of the kernel

    def batch_spec(cols):
        # Blocked along the batch (sublane) axis, natural row-major layout.
        return pl.BlockSpec((tile_b, cols), lambda i: (i, 0))

    def resident(arr):
        # Constant index map: stays VMEM-resident across grid steps.
        return pl.BlockSpec(arr.shape, lambda i: (0, 0))

    inputs = (
        state_p, eps_p,
        params["w1"], params["b1"],
        params["w2"], params["b2"],
        params["w3"], params["b3"],
        params["w_mu"], params["b_mu"],
        sig,
    )
    in_specs = [
        batch_spec(state_dim), batch_spec(A),
        resident(params["w1"]), resident(params["b1"]),
        resident(params["w2"]), resident(params["b2"]),
        resident(params["w3"]), resident(params["b3"]),
        resident(params["w_mu"]), resident(params["b_mu"]),
        resident(sig),
    ]

    action_p = pl.pallas_call(
        _ppo_actor_kernel,
        grid=grid,
        in_specs=in_specs,
        out_specs=batch_spec(A),
        out_shape=jax.ShapeDtypeStruct((b_padded, A), jnp.float32),
        compiler_params=pltpu.CompilerParams(
            dimension_semantics=("parallel",)),
    )(*inputs)

    action = action_p[:B]

    # log_prob(action) with action = mu + sig*eps reduces exactly to a function
    # of eps and log_sig; entropy is batch-independent. Both stay in the
    # wrapper as fused XLA elementwise ops -> no extra kernel output streams.
    log_prob = -0.5 * (eps * eps) - log_sig - _HALF_LOG_2PI
    entropy = jnp.broadcast_to(0.5 + _HALF_LOG_2PI + log_sig, (B, A))
    return action, log_prob, entropy


def _xavier_normal(key, fan_out, fan_in):
    std = math.sqrt(2.0 / (fan_in + fan_out))
    # torch.nn.Linear weight layout: [out_features, in_features]
    return jax.random.normal(key, (fan_out, fan_in), dtype=jnp.float32) * std


def init_params(key, state_dim, input_layer, actor_hidden, action_dim):
    ks = jax.random.split(key, 8)

    def bias(k, fan_in, size):
        bound = 1.0 / math.sqrt(fan_in)
        return jax.random.uniform(k, (1, size), jnp.float32, -bound, bound)

    return {
        "w1": _xavier_normal(ks[0], input_layer, state_dim),
        "b1": bias(ks[1], state_dim, input_layer),
        "w2": _xavier_normal(ks[2], actor_hidden, input_layer),
        "b2": bias(ks[3], input_layer, actor_hidden),
        "w3": _xavier_normal(ks[4], actor_hidden, actor_hidden),
        "b3": bias(ks[5], actor_hidden, actor_hidden),
        "w_mu": _xavier_normal(ks[6], action_dim, actor_hidden),
        "b_mu": bias(ks[7], actor_hidden, action_dim),
        # torch.nn.Parameter(torch.zeros(action_size[-1]))
        "log_sig": jnp.zeros((1, action_dim), jnp.float32),
    }


# Pure-JAX reference matching the torch module's math exactly.
def _ref_forward(state, params, eps):
    def lin(x, w, b):
        return x @ w.T + b

    h = jax.nn.relu(lin(state, params["w1"], params["b1"]))
    h = jax.nn.relu(lin(h, params["w2"], params["b2"]))
    h = jax.nn.relu(lin(h, params["w3"], params["b3"]))
    mu = lin(h, params["w_mu"], params["b_mu"])
    log_sig = params["log_sig"]
    sig = jnp.exp(log_sig)
    action = mu + sig * eps
    z = (action - mu) / sig
    logp = -0.5 * z * z - log_sig - _HALF_LOG_2PI
    ent = jnp.broadcast_to(0.5 + _HALF_LOG_2PI + log_sig, mu.shape)
    return action, logp, ent


if __name__ == "__main__":
    # Shapes consistent with the module: state_size=(32,), action_size=(8,).
    # B=200 exercises a 2-step grid plus the batch-padding path.
    B, STATE_DIM = 200, 32
    INPUT_LAYER, ACTOR_HIDDEN = 64, 32
    ACTION_DIM = 8

    key = jax.random.PRNGKey(0)
    k_params, k_state, k_eps = jax.random.split(key, 3)

    params = init_params(k_params, STATE_DIM, INPUT_LAYER, ACTOR_HIDDEN, ACTION_DIM)
    state = jax.random.normal(k_state, (B, STATE_DIM), dtype=jnp.float32)
    eps = jax.random.normal(k_eps, (B, ACTION_DIM), dtype=jnp.float32)

    fwd = jax.jit(ppo_actor_forward)
    action_out, log_prob, entropy = fwd(state, params, eps)
    jax.block_until_ready((action_out, log_prob, entropy))

    # correctness check vs pure-JAX reference
    ref_a, ref_lp, ref_e = _ref_forward(state, params, eps)
    assert action_out.shape == (B, ACTION_DIM)
    assert jnp.allclose(action_out, ref_a, atol=1e-4, rtol=1e-4)
    assert jnp.allclose(log_prob, ref_lp, atol=1e-4, rtol=1e-4)
    assert jnp.allclose(entropy, ref_e, atol=1e-4, rtol=1e-4)

    # TODO(synk): discrete (Categorical) branch and action_in override of PPOActor
    # not implemented — the module defaults to the continuous Normal sample branch
    # exercised here.
    print("KERNEL_OK")
</pallas_src>

<mosaic_0001>
module attributes {stable_mosaic.version = 11 : i64} {
  func.func @_ppo_actor_kernel(%arg0: i32, %arg1: memref<128x32xf32, #tpu.memory_space<vmem>>, %arg2: memref<128x8xf32, #tpu.memory_space<vmem>>, %arg3: memref<64x32xf32, #tpu.memory_space<vmem>>, %arg4: memref<1x64xf32, #tpu.memory_space<vmem>>, %arg5: memref<32x64xf32, #tpu.memory_space<vmem>>, %arg6: memref<1x32xf32, #tpu.memory_space<vmem>>, %arg7: memref<32x32xf32, #tpu.memory_space<vmem>>, %arg8: memref<1x32xf32, #tpu.memory_space<vmem>>, %arg9: memref<8x32xf32, #tpu.memory_space<vmem>>, %arg10: memref<1x8xf32, #tpu.memory_space<vmem>>, %arg11: memref<1x8xf32, #tpu.memory_space<vmem>>, %arg12: memref<128x8xf32, #tpu.memory_space<vmem>>) attributes {dimension_semantics = [#tpu.dimension_semantics<parallel>], iteration_bounds = array<i64: 2>, scalar_prefetch = 0 : i64, scratch_operands = 0 : i64, tpu.core_type = #tpu.core_type<tc>, window_params = [{transform_indices = @transform_0, window_bounds = array<i64: 128, 32>}, {transform_indices = @transform_1, window_bounds = array<i64: 128, 8>}, {pipeline_mode = #tpu.pipeline_mode<synchronous>, transform_indices = @transform_2, window_bounds = array<i64: 64, 32>}, {pipeline_mode = #tpu.pipeline_mode<synchronous>, transform_indices = @transform_3, window_bounds = array<i64: 1, 64>}, {pipeline_mode = #tpu.pipeline_mode<synchronous>, transform_indices = @transform_4, window_bounds = array<i64: 32, 64>}, {pipeline_mode = #tpu.pipeline_mode<synchronous>, transform_indices = @transform_5, window_bounds = array<i64: 1, 32>}, {pipeline_mode = #tpu.pipeline_mode<synchronous>, transform_indices = @transform_6, window_bounds = array<i64: 32, 32>}, {pipeline_mode = #tpu.pipeline_mode<synchronous>, transform_indices = @transform_7, window_bounds = array<i64: 1, 32>}, {pipeline_mode = #tpu.pipeline_mode<synchronous>, transform_indices = @transform_8, window_bounds = array<i64: 8, 32>}, {pipeline_mode = #tpu.pipeline_mode<synchronous>, transform_indices = @transform_9, window_bounds = array<i64: 1, 8>}, {pipeline_mode = #tpu.pipeline_mode<synchronous>, transform_indices = @transform_10, window_bounds = array<i64: 1, 8>}, {transform_indices = @transform_11, window_bounds = array<i64: 128, 8>}]} {
    %c0 = arith.constant 0 : index
    %c0_0 = arith.constant 0 : index
    %0 = vector.load %arg1[%c0, %c0_0] : memref<128x32xf32, #tpu.memory_space<vmem>>, vector<128x32xf32>
    %c0_1 = arith.constant 0 : index
    %c0_2 = arith.constant 0 : index
    %1 = vector.load %arg3[%c0_1, %c0_2] : memref<64x32xf32, #tpu.memory_space<vmem>>, vector<64x32xf32>
    %cst = arith.constant dense<0.000000e+00> : vector<128x64xf32>
    %2 = tpu.matmul %0, %1, %cst {dimension_numbers = #tpu.dot_dimension_numbers<[1], [1], [0], [0], [0, 0, 1, 0], [], []>} : vector<128x32xf32>, vector<64x32xf32>, vector<128x64xf32> -> vector<128x64xf32>
    %c0_3 = arith.constant 0 : index
    %c0_4 = arith.constant 0 : index
    %3 = vector.load %arg4[%c0_3, %c0_4] : memref<1x64xf32, #tpu.memory_space<vmem>>, vector<1x64xf32>
    %4 = vector.broadcast %3 : vector<1x64xf32> to vector<128x64xf32>
    %5 = arith.addf %2, %4 : vector<128x64xf32>
    %cst_5 = arith.constant 0.000000e+00 : f32
    %6 = vector.broadcast %cst_5 : f32 to vector<128x64xf32>
    %7 = arith.maximumf %5, %6 : vector<128x64xf32>
    %c0_6 = arith.constant 0 : index
    %c0_7 = arith.constant 0 : index
    %8 = vector.load %arg5[%c0_6, %c0_7] : memref<32x64xf32, #tpu.memory_space<vmem>>, vector<32x64xf32>
    %cst_8 = arith.constant dense<0.000000e+00> : vector<128x32xf32>
    %9 = tpu.matmul %7, %8, %cst_8 {dimension_numbers = #tpu.dot_dimension_numbers<[1], [1], [0], [0], [0, 0, 1, 0], [], []>} : vector<128x64xf32>, vector<32x64xf32>, vector<128x32xf32> -> vector<128x32xf32>
    %c0_9 = arith.constant 0 : index
    %c0_10 = arith.constant 0 : index
    %10 = vector.load %arg6[%c0_9, %c0_10] : memref<1x32xf32, #tpu.memory_space<vmem>>, vector<1x32xf32>
    %11 = vector.broadcast %10 : vector<1x32xf32> to vector<128x32xf32>
    %12 = arith.addf %9, %11 : vector<128x32xf32>
    %cst_11 = arith.constant 0.000000e+00 : f32
    %13 = vector.broadcast %cst_11 : f32 to vector<128x32xf32>
    %14 = arith.maximumf %12, %13 : vector<128x32xf32>
    %c0_12 = arith.constant 0 : index
    %c0_13 = arith.constant 0 : index
    %15 = vector.load %arg7[%c0_12, %c0_13] : memref<32x32xf32, #tpu.memory_space<vmem>>, vector<32x32xf32>
    %cst_14 = arith.constant dense<0.000000e+00> : vector<128x32xf32>
    %16 = tpu.matmul %14, %15, %cst_14 {dimension_numbers = #tpu.dot_dimension_numbers<[1], [1], [0], [0], [0, 0, 1, 0], [], []>} : vector<128x32xf32>, vector<32x32xf32>, vector<128x32xf32> -> vector<128x32xf32>
    %c0_15 = arith.constant 0 : index
    %c0_16 = arith.constant 0 : index
    %17 = vector.load %arg8[%c0_15, %c0_16] : memref<1x32xf32, #tpu.memory_space<vmem>>, vector<1x32xf32>
    %18 = vector.broadcast %17 : vector<1x32xf32> to vector<128x32xf32>
    %19 = arith.addf %16, %18 : vector<128x32xf32>
    %cst_17 = arith.constant 0.000000e+00 : f32
    %20 = vector.broadcast %cst_17 : f32 to vector<128x32xf32>
    %21 = arith.maximumf %19, %20 : vector<128x32xf32>
    %c0_18 = arith.constant 0 : index
    %c0_19 = arith.constant 0 : index
    %22 = vector.load %arg9[%c0_18, %c0_19] : memref<8x32xf32, #tpu.memory_space<vmem>>, vector<8x32xf32>
    %cst_20 = arith.constant dense<0.000000e+00> : vector<128x8xf32>
    %23 = tpu.matmul %21, %22, %cst_20 {dimension_numbers = #tpu.dot_dimension_numbers<[1], [1], [0], [0], [0, 0, 1, 0], [], []>} : vector<128x32xf32>, vector<8x32xf32>, vector<128x8xf32> -> vector<128x8xf32>
    %c0_21 = arith.constant 0 : index
    %c0_22 = arith.constant 0 : index
    %24 = vector.load %arg10[%c0_21, %c0_22] : memref<1x8xf32, #tpu.memory_space<vmem>>, vector<1x8xf32>
    %25 = vector.broadcast %24 : vector<1x8xf32> to vector<128x8xf32>
    %26 = arith.addf %23, %25 : vector<128x8xf32>
    %c0_23 = arith.constant 0 : index
    %c0_24 = arith.constant 0 : index
    %27 = vector.load %arg11[%c0_23, %c0_24] : memref<1x8xf32, #tpu.memory_space<vmem>>, vector<1x8xf32>
    %c0_25 = arith.constant 0 : index
    %c0_26 = arith.constant 0 : index
    %28 = vector.load %arg2[%c0_25, %c0_26] : memref<128x8xf32, #tpu.memory_space<vmem>>, vector<128x8xf32>
    %29 = vector.broadcast %27 : vector<1x8xf32> to vector<128x8xf32>
    %30 = arith.mulf %29, %28 : vector<128x8xf32>
    %31 = arith.addf %26, %30 : vector<128x8xf32>
    %c0_27 = arith.constant 0 : index
    %c0_28 = arith.constant 0 : index
    %32 = vector.load %arg12[%c0_27, %c0_28] : memref<128x8xf32, #tpu.memory_space<vmem>>, vector<128x8xf32>
    tpu.vector_store %arg12[%c0_27, %c0_28], %31 {strides = array<i32>} : memref<128x8xf32, #tpu.memory_space<vmem>>, vector<128x8xf32>,
    return
  }
  func.func @transform_0(%arg0: i32) -> (i32, i32) {
    %c0_i32 = arith.constant 0 : i32
    %c0_i32_0 = arith.constant 0 : i32
    return %arg0, %c0_i32 : i32, i32
  }
  func.func @transform_1(%arg0: i32) -> (i32, i32) {
    %c0_i32 = arith.constant 0 : i32
    %c0_i32_0 = arith.constant 0 : i32
    return %arg0, %c0_i32 : i32, i32
  }
  func.func @transform_2(%arg0: i32) -> (i32, i32) {
    %c0_i32 = arith.constant 0 : i32
    %c0_i32_0 = arith.constant 0 : i32
    %c0_i32_1 = arith.constant 0 : i32
    return %c0_i32, %c0_i32_0 : i32, i32
  }
  func.func @transform_3(%arg0: i32) -> (i32, i32) {
    %c0_i32 = arith.constant 0 : i32
    %c0_i32_0 = arith.constant 0 : i32
    %c0_i32_1 = arith.constant 0 : i32
    return %c0_i32, %c0_i32_0 : i32, i32
  }
  func.func @transform_4(%arg0: i32) -> (i32, i32) {
    %c0_i32 = arith.constant 0 : i32
    %c0_i32_0 = arith.constant 0 : i32
    %c0_i32_1 = arith.constant 0 : i32
    return %c0_i32, %c0_i32_0 : i32, i32
  }
  func.func @transform_5(%arg0: i32) -> (i32, i32) {
    %c0_i32 = arith.constant 0 : i32
    %c0_i32_0 = arith.constant 0 : i32
    %c0_i32_1 = arith.constant 0 : i32
    return %c0_i32, %c0_i32_0 : i32, i32
  }
  func.func @transform_6(%arg0: i32) -> (i32, i32) {
    %c0_i32 = arith.constant 0 : i32
    %c0_i32_0 = arith.constant 0 : i32
    %c0_i32_1 = arith.constant 0 : i32
    return %c0_i32, %c0_i32_0 : i32, i32
  }
  func.func @transform_7(%arg0: i32) -> (i32, i32) {
    %c0_i32 = arith.constant 0 : i32
    %c0_i32_0 = arith.constant 0 : i32
    %c0_i32_1 = arith.constant 0 : i32
    return %c0_i32, %c0_i32_0 : i32, i32
  }
  func.func @transform_8(%arg0: i32) -> (i32, i32) {
    %c0_i32 = arith.constant 0 : i32
    %c0_i32_0 = arith.constant 0 : i32
    %c0_i32_1 = arith.constant 0 : i32
    return %c0_i32, %c0_i32_0 : i32, i32
  }
  func.func @transform_9(%arg0: i32) -> (i32, i32) {
    %c0_i32 = arith.constant 0 : i32
    %c0_i32_0 = arith.constant 0 : i32
    %c0_i32_1 = arith.constant 0 : i32
    return %c0_i32, %c0_i32_0 : i32, i32
  }
  func.func @transform_10(%arg0: i32) -> (i32, i32) {
    %c0_i32 = arith.constant 0 : i32
    %c0_i32_0 = arith.constant 0 : i32
    %c0_i32_1 = arith.constant 0 : i32
    return %c0_i32, %c0_i32_0 : i32, i32
  }
  func.func @transform_11(%arg0: i32) -> (i32, i32) {
    %c0_i32 = arith.constant 0 : i32
    %c0_i32_0 = arith.constant 0 : i32
    return %arg0, %c0_i32 : i32, i32
  }
}

</mosaic_0001>

<llo_original>
// kernel: ppo_actor_forward.1
$region0: #{ppo_actor_forward.1}
  #allocation0 [shape = 'u32[]', space=smem, size = 0x4, offset = 0x4, fixed_abs, tag = 'smem constant byte address 0x4 - core index']
  #allocation1 [shape = 'u32[144,128]{1,0:T(1,128)}', space=vmem, size = 0x12000, scoped, tag = 'internal scratch']
  %s0 = inlined_call_operand.vmem [shape: f32[256,32], index: 0, kind: input, shape index: {}]
  %s1 = inlined_call_operand.vmem [shape: f32[256,8], index: 1, kind: input, shape index: {}]
  %s2 = inlined_call_operand.vmem [shape: f32[64,32], index: 2, kind: input, shape index: {}]
  %s3 = inlined_call_operand.vmem [shape: f32[1,64], index: 3, kind: input, shape index: {}]
  %s4 = inlined_call_operand.vmem [shape: f32[32,64], index: 4, kind: input, shape index: {}]
  %s5 = inlined_call_operand.vmem [shape: f32[1,32], index: 5, kind: input, shape index: {}]
  %s6 = inlined_call_operand.vmem [shape: f32[32,32], index: 6, kind: input, shape index: {}]
  %s7 = inlined_call_operand.vmem [shape: f32[1,32], index: 7, kind: input, shape index: {}]
  %s8 = inlined_call_operand.vmem [shape: f32[8,32], index: 8, kind: input, shape index: {}]
  %s9 = inlined_call_operand.vmem [shape: f32[1,8], index: 9, kind: input, shape index: {}]
  %s10 = inlined_call_operand.vmem [shape: f32[1,8], index: 10, kind: input, shape index: {}]
  %s11 = inlined_call_operand.vmem [shape: f32[256,8], index: 11, kind: output, shape index: {}]
  %s12 = sld [smem:[#allocation0]]
  $region77: #{ppo_actor_forward.1} parent=0
    _
  %s14 = ssub.s32 1, %s12
  %s15 = scalar_select 0, %s14, %s12
  loop: start=0, step=1, limit=4
  $region2: #{ppo_actor_forward.1} parent=0 // loop_pre_header
    _
  $region3: #{ppo_actor_forward.1} parent=0 // loop_header
    %s17 = sphi 0, %s21
    %p18 = scmp.ge.s32.totalorder %s17, 4
    %s27 = sphi 0, %s29
    %s30 = sphi 0, %s27
    %s31 = sphi 0, %s30
    %s47 = sphi 0, %s31
    %s53 = sphi 0, %s55
    %s56 = sphi 0, %s53
    %s57 = sphi 0, %s56
    %s73 = sphi 0, %s57
    %s77 = sphi 0, %s77
    %s79 = sphi 0, %s77
    %s80 = sphi 0, %s79
    %s94 = sphi 0, %s80
    %s98 = sphi 0, %s98
    %s100 = sphi 0, %s98
    %s101 = sphi 0, %s100
    %s115 = sphi 0, %s101
    %s119 = sphi 0, %s119
    %s121 = sphi 0, %s119
    %s122 = sphi 0, %s121
    %s136 = sphi 0, %s122
    %s140 = sphi 0, %s140
    %s142 = sphi 0, %s140
    %s143 = sphi 0, %s142
    %s157 = sphi 0, %s143
    %s161 = sphi 0, %s161
    %s163 = sphi 0, %s161
    %s164 = sphi 0, %s163
    %s178 = sphi 0, %s164
    %s182 = sphi 0, %s182
    %s184 = sphi 0, %s182
    %s185 = sphi 0, %s184
    %s199 = sphi 0, %s185
    %s203 = sphi 0, %s203
    %s205 = sphi 0, %s203
    %s206 = sphi 0, %s205
    %s220 = sphi 0, %s206
    %s224 = sphi 0, %s224
    %s226 = sphi 0, %s224
    %s227 = sphi 0, %s226
    %s241 = sphi 0, %s227
    %s245 = sphi 0, %s245
    %s247 = sphi 0, %s245
    %s248 = sphi 0, %s247
    %s262 = sphi 0, %s248
    %s268 = sphi 0, %s270
    %s271 = sphi 0, %s268
    %s272 = sphi 0, %s271
    %s288 = sphi 0, %s272
  $region4: #{ppo_actor_forward.1} parent=0 // loop_header_branch
    %20 = sbr.rel (%p18) target = $region8
  $region5: #{ppo_actor_forward.1} parent=0 // loop_body
    %s22 = ssub.s32 %s17, 1
    %s23 = ssub.s32 %s17, 2
    %s24 = sadd.s32 %s17, 1
    %s25 = ssub.s32 %s17, %s24
    %p26 = scmp.eq.s32.totalorder %s25, 0
    %s28 = sadd.s32 %s27, 1
    %s29 = scalar_select %p26, %s27, %s28
    %p32 = pneg %p26
    %p33 = scmp.eq.s32.totalorder %s17, 1
    %p34 = por %p32, %p33
    %p35 = scmp.ne.s32.totalorder %s27, %s30
    %p36 = scmp.eq.s32.totalorder %s17, 0
    %p37 = por %p35, %p36
    %p38 = scmp.ne.s32.totalorder %s27, %s30
    %p39 = scmp.eq.s32.totalorder %s22, 1
    %p40 = por %p38, %p39
    %p41 = scmp.ne.s32.totalorder %s30, %s31
    %p42 = scmp.eq.s32.totalorder %s22, 0
    %p43 = por %p41, %p42
    %p44 = scmp.ne.s32.totalorder %s30, %s31
    %p45 = scmp.eq.s32.totalorder %s23, 1
    %p46 = por %p44, %p45
    %p48 = scmp.ne.s32.totalorder %s31, %s47
    %p49 = scmp.eq.s32.totalorder %s23, 0
    %p50 = por %p48, %p49
    %s51 = ssub.s32 %s17, %s24
    %p52 = scmp.eq.s32.totalorder %s51, 0
    %s54 = sadd.s32 %s53, 1
    %s55 = scalar_select %p52, %s53, %s54
    %p58 = pneg %p52
    %p59 = scmp.eq.s32.totalorder %s17, 1
    %p60 = por %p58, %p59
    %p61 = scmp.ne.s32.totalorder %s53, %s56
    %p62 = scmp.eq.s32.totalorder %s17, 0
    %p63 = por %p61, %p62
    %p64 = scmp.ne.s32.totalorder %s53, %s56
    %p65 = scmp.eq.s32.totalorder %s22, 1
    %p66 = por %p64, %p65
    %p67 = scmp.ne.s32.totalorder %s56, %s57
    %p68 = scmp.eq.s32.totalorder %s22, 0
    %p69 = por %p67, %p68
    %p70 = scmp.ne.s32.totalorder %s56, %s57
    %p71 = scmp.eq.s32.totalorder %s23, 1
    %p72 = por %p70, %p71
    %p74 = scmp.ne.s32.totalorder %s57, %s73
    %p75 = scmp.eq.s32.totalorder %s23, 0
    %p76 = por %p74, %p75
    %s78 = sadd.s32 %s77, 1
    %p81 = scmp.eq.s32.totalorder %s17, 1
    %p82 = scmp.ne.s32.totalorder %s77, %s79
    %p83 = scmp.eq.s32.totalorder %s17, 0
    %p84 = por %p82, %p83
    %p85 = scmp.ne.s32.totalorder %s77, %s79
    %p86 = scmp.eq.s32.totalorder %s22, 1
    %p87 = por %p85, %p86
    %p88 = scmp.ne.s32.totalorder %s79, %s80
    %p89 = scmp.eq.s32.totalorder %s22, 0
    %p90 = por %p88, %p89
    %p91 = scmp.ne.s32.totalorder %s79, %s80
    %p92 = scmp.eq.s32.totalorder %s23, 1
    %p93 = por %p91, %p92
    %p95 = scmp.ne.s32.totalorder %s80, %s94
    %p96 = scmp.eq.s32.totalorder %s23, 0
    %p97 = por %p95, %p96
    %s99 = sadd.s32 %s98, 1
    %p102 = scmp.eq.s32.totalorder %s17, 1
    %p103 = scmp.ne.s32.totalorder %s98, %s100
    %p104 = scmp.eq.s32.totalorder %s17, 0
    %p105 = por %p103, %p104
    %p106 = scmp.ne.s32.totalorder %s98, %s100
    %p107 = scmp.eq.s32.totalorder %s22, 1
    %p108 = por %p106, %p107
    %p109 = scmp.ne.s32.totalorder %s100, %s101
    %p110 = scmp.eq.s32.totalorder %s22, 0
    %p111 = por %p109, %p110
    %p112 = scmp.ne.s32.totalorder %s100, %s101
    %p113 = scmp.eq.s32.totalorder %s23, 1
    %p114 = por %p112, %p113
    %p116 = scmp.ne.s32.totalorder %s101, %s115
    %p117 = scmp.eq.s32.totalorder %s23, 0
    %p118 = por %p116, %p117
    %s120 = sadd.s32 %s119, 1
    %p123 = scmp.eq.s32.totalorder %s17, 1
    %p124 = scmp.ne.s32.totalorder %s119, %s121
    %p125 = scmp.eq.s32.totalorder %s17, 0
    %p126 = por %p124, %p125
    %p127 = scmp.ne.s32.totalorder %s119, %s121
    %p128 = scmp.eq.s32.totalorder %s22, 1
    %p129 = por %p127, %p128
    %p130 = scmp.ne.s32.totalorder %s121, %s122
    %p131 = scmp.eq.s32.totalorder %s22, 0
    %p132 = por %p130, %p131
    %p133 = scmp.ne.s32.totalorder %s121, %s122
    %p134 = scmp.eq.s32.totalorder %s23, 1
    %p135 = por %p133, %p134
    %p137 = scmp.ne.s32.totalorder %s122, %s136
    %p138 = scmp.eq.s32.totalorder %s23, 0
    %p139 = por %p137, %p138
    %s141 = sadd.s32 %s140, 1
    %p144 = scmp.eq.s32.totalorder %s17, 1
    %p145 = scmp.ne.s32.totalorder %s140, %s142
    %p146 = scmp.eq.s32.totalorder %s17, 0
    %p147 = por %p145, %p146
    %p148 = scmp.ne.s32.totalorder %s140, %s142
    %p149 = scmp.eq.s32.totalorder %s22, 1
    %p150 = por %p148, %p149
    %p151 = scmp.ne.s32.totalorder %s142, %s143
    %p152 = scmp.eq.s32.totalorder %s22, 0
    %p153 = por %p151, %p152
    %p154 = scmp.ne.s32.totalorder %s142, %s143
    %p155 = scmp.eq.s32.totalorder %s23, 1
    %p156 = por %p154, %p155
    %p158 = scmp.ne.s32.totalorder %s143, %s157
    %p159 = scmp.eq.s32.totalorder %s23, 0
    %p160 = por %p158, %p159
    %s162 = sadd.s32 %s161, 1
    %p165 = scmp.eq.s32.totalorder %s17, 1
    %p166 = scmp.ne.s32.totalorder %s161, %s163
    %p167 = scmp.eq.s32.totalorder %s17, 0
    %p168 = por %p166, %p167
    %p169 = scmp.ne.s32.totalorder %s161, %s163
    %p170 = scmp.eq.s32.totalorder %s22, 1
    %p171 = por %p169, %p170
    %p172 = scmp.ne.s32.totalorder %s163, %s164
    %p173 = scmp.eq.s32.totalorder %s22, 0
    %p174 = por %p172, %p173
    %p175 = scmp.ne.s32.totalorder %s163, %s164
    %p176 = scmp.eq.s32.totalorder %s23, 1
    %p177 = por %p175, %p176
    %p179 = scmp.ne.s32.totalorder %s164, %s178
    %p180 = scmp.eq.s32.totalorder %s23, 0
    %p181 = por %p179, %p180
    %s183 = sadd.s32 %s182, 1
    %p186 = scmp.eq.s32.totalorder %s17, 1
    %p187 = scmp.ne.s32.totalorder %s182, %s184
    %p188 = scmp.eq.s32.totalorder %s17, 0
    %p189 = por %p187, %p188
    %p190 = scmp.ne.s32.totalorder %s182, %s184
    %p191 = scmp.eq.s32.totalorder %s22, 1
    %p192 = por %p190, %p191
    %p193 = scmp.ne.s32.totalorder %s184, %s185
    %p194 = scmp.eq.s32.totalorder %s22, 0
    %p195 = por %p193, %p194
    %p196 = scmp.ne.s32.totalorder %s184, %s185
    %p197 = scmp.eq.s32.totalorder %s23, 1
    %p198 = por %p196, %p197
    %p200 = scmp.ne.s32.totalorder %s185, %s199
    %p201 = scmp.eq.s32.totalorder %s23, 0
    %p202 = por %p200, %p201
    %s204 = sadd.s32 %s203, 1
    %p207 = scmp.eq.s32.totalorder %s17, 1
    %p208 = scmp.ne.s32.totalorder %s203, %s205
    %p209 = scmp.eq.s32.totalorder %s17, 0
    %p210 = por %p208, %p209
    %p211 = scmp.ne.s32.totalorder %s203, %s205
    %p212 = scmp.eq.s32.totalorder %s22, 1
    %p213 = por %p211, %p212
    %p214 = scmp.ne.s32.totalorder %s205, %s206
    %p215 = scmp.eq.s32.totalorder %s22, 0
    %p216 = por %p214, %p215
    %p217 = scmp.ne.s32.totalorder %s205, %s206
    %p218 = scmp.eq.s32.totalorder %s23, 1
    %p219 = por %p217, %p218
    %p221 = scmp.ne.s32.totalorder %s206, %s220
    %p222 = scmp.eq.s32.totalorder %s23, 0
    %p223 = por %p221, %p222
    %s225 = sadd.s32 %s224, 1
    %p228 = scmp.eq.s32.totalorder %s17, 1
    %p229 = scmp.ne.s32.totalorder %s224, %s226
    %p230 = scmp.eq.s32.totalorder %s17, 0
    %p231 = por %p229, %p230
    %p232 = scmp.ne.s32.totalorder %s224, %s226
    %p233 = scmp.eq.s32.totalorder %s22, 1
    %p234 = por %p232, %p233
    %p235 = scmp.ne.s32.totalorder %s226, %s227
    %p236 = scmp.eq.s32.totalorder %s22, 0
    %p237 = por %p235, %p236
    %p238 = scmp.ne.s32.totalorder %s226, %s227
    %p239 = scmp.eq.s32.totalorder %s23, 1
    %p240 = por %p238, %p239
    %p242 = scmp.ne.s32.totalorder %s227, %s241
    %p243 = scmp.eq.s32.totalorder %s23, 0
    %p244 = por %p242, %p243
    %s246 = sadd.s32 %s245, 1
    %p249 = scmp.eq.s32.totalorder %s17, 1
    %p250 = scmp.ne.s32.totalorder %s245, %s247
    %p251 = scmp.eq.s32.totalorder %s17, 0
    %p252 = por %p250, %p251
    %p253 = scmp.ne.s32.totalorder %s245, %s247
    %p254 = scmp.eq.s32.totalorder %s22, 1
    %p255 = por %p253, %p254
    %p256 = scmp.ne.s32.totalorder %s247, %s248
    %p257 = scmp.eq.s32.totalorder %s22, 0
    %p258 = por %p256, %p257
    %p259 = scmp.ne.s32.totalorder %s247, %s248
    %p260 = scmp.eq.s32.totalorder %s23, 1
    %p261 = por %p259, %p260
    %p263 = scmp.ne.s32.totalorder %s248, %s262
    %p264 = scmp.eq.s32.totalorder %s23, 0
    %p265 = por %p263, %p264
    %s266 = ssub.s32 %s17, %s24
    %p267 = scmp.eq.s32.totalorder %s266, 0
    %s269 = sadd.s32 %s268, 1
    %s270 = scalar_select %p267, %s268, %s269
    %p273 = pneg %p267
    %p274 = scmp.eq.s32.totalorder %s17, 1
    %p275 = por %p273, %p274
    %p276 = scmp.ne.s32.totalorder %s268, %s271
    %p277 = scmp.eq.s32.totalorder %s17, 0
    %p278 = por %p276, %p277
    %p279 = scmp.ne.s32.totalorder %s268, %s271
    %p280 = scmp.eq.s32.totalorder %s22, 1
    %p281 = por %p279, %p280
    %p282 = scmp.ne.s32.totalorder %s271, %s272
    %p283 = scmp.eq.s32.totalorder %s22, 0
    %p284 = por %p282, %p283
    %p285 = scmp.ne.s32.totalorder %s271, %s272
    %p286 = scmp.eq.s32.totalorder %s23, 1
    %p287 = por %p285, %p286
    %p289 = scmp.ne.s32.totalorder %s272, %s288
    %p290 = scmp.eq.s32.totalorder %s23, 0
    %p291 = por %p289, %p290
    %p292 = scmp.le.s32.totalorder 1, %s17
    %p293 = scmp.lt.s32.totalorder %s17, 3
    %p294 = pnand %p292, %p293
    %p295 = pneg %p294
    // Predicated region
    $region9: #{ppo_actor_forward.1} parent=5 // pred_check
      _
    $region10: #{ppo_actor_forward.1} parent=5 // pred_check_branch
      %297 = sbr.rel (%p294) target = $region12
    $region11: #{ppo_actor_forward.1} parent=5 // pred_region
      %s298 = ssub.s32 %s17, 1
      // Predicated region
      $region13: #{ppo_actor_forward.1} parent=11 // pred_check
        %p299 = pneg %p90
      $region14: #{ppo_actor_forward.1} parent=11 // pred_check_branch
        %301 = sbr.rel (%p299) target = $region16
      $region15: #{ppo_actor_forward.1} parent=11 // pred_region
        _
      $region16: #{ppo_actor_forward.1} parent=11 // pred_fallthru
        _
      // Predicated region
      $region17: #{ppo_actor_forward.1} parent=11 // pred_check
        %p302 = pneg %p111
      $region18: #{ppo_actor_forward.1} parent=11 // pred_check_branch
        %304 = sbr.rel (%p302) target = $region20
      $region19: #{ppo_actor_forward.1} parent=11 // pred_region
        _
      $region20: #{ppo_actor_forward.1} parent=11 // pred_fallthru
        _
      // Predicated region
      $region21: #{ppo_actor_forward.1} parent=11 // pred_check
        %p305 = pneg %p132
      $region22: #{ppo_actor_forward.1} parent=11 // pred_check_branch
        %307 = sbr.rel (%p305) target = $region24
      $region23: #{ppo_actor_forward.1} parent=11 // pred_region
        _
      $region24: #{ppo_actor_forward.1} parent=11 // pred_fallthru
        _
      // Predicated region
      $region25: #{ppo_actor_forward.1} parent=11 // pred_check
        %p308 = pneg %p153
      $region26: #{ppo_actor_forward.1} parent=11 // pred_check_branch
        %310 = sbr.rel (%p308) target = $region28
      $region27: #{ppo_actor_forward.1} parent=11 // pred_region
        _
      $region28: #{ppo_actor_forward.1} parent=11 // pred_fallthru
        _
      // Predicated region
      $region29: #{ppo_actor_forward.1} parent=11 // pred_check
        %p311 = pneg %p174
      $region30: #{ppo_actor_forward.1} parent=11 // pred_check_branch
        %313 = sbr.rel (%p311) target = $region32
      $region31: #{ppo_actor_forward.1} parent=11 // pred_region
        _
      $region32: #{ppo_actor_forward.1} parent=11 // pred_fallthru
        _
      // Predicated region
      $region33: #{ppo_actor_forward.1} parent=11 // pred_check
        %p314 = pneg %p195
      $region34: #{ppo_actor_forward.1} parent=11 // pred_check_branch
        %316 = sbr.rel (%p314) target = $region36
      $region35: #{ppo_actor_forward.1} parent=11 // pred_region
        _
      $region36: #{ppo_actor_forward.1} parent=11 // pred_fallthru
        _
      // Predicated region
      $region37: #{ppo_actor_forward.1} parent=11 // pred_check
        %p317 = pneg %p216
      $region38: #{ppo_actor_forward.1} parent=11 // pred_check_branch
        %319 = sbr.rel (%p317) target = $region40
      $region39: #{ppo_actor_forward.1} parent=11 // pred_region
        _
      $region40: #{ppo_actor_forward.1} parent=11 // pred_fallthru
        _
      // Predicated region
      $region41: #{ppo_actor_forward.1} parent=11 // pred_check
        %p320 = pneg %p237
      $region42: #{ppo_actor_forward.1} parent=11 // pred_check_branch
        %322 = sbr.rel (%p320) target = $region44
      $region43: #{ppo_actor_forward.1} parent=11 // pred_region
        _
      $region44: #{ppo_actor_forward.1} parent=11 // pred_fallthru
        _
      // Predicated region
      $region45: #{ppo_actor_forward.1} parent=11 // pred_check
        %p323 = pneg %p258
      $region46: #{ppo_actor_forward.1} parent=11 // pred_check_branch
        %325 = sbr.rel (%p323) target = $region48
      $region47: #{ppo_actor_forward.1} parent=11 // pred_region
        _
      $region48: #{ppo_actor_forward.1} parent=11 // pred_fallthru
        _
    $region12: #{ppo_actor_forward.1} parent=5 // pred_fallthru
      _
    %p326 = scmp.lt.s32.totalorder %s17, 2
    // Predicated region
    $region49: #{ppo_actor_forward.1} parent=5 // pred_check
      %p327 = pneg %p326
    $region50: #{ppo_actor_forward.1} parent=5 // pred_check_branch
      %329 = sbr.rel (%p327) target = $region52
    $region51: #{ppo_actor_forward.1} parent=5 // pred_region
      // Predicated region
      $region53: #{ppo_actor_forward.1} parent=51 // pred_check
        %p330 = pneg %p37
      $region54: #{ppo_actor_forward.1} parent=51 // pred_check_branch
        %332 = sbr.rel (%p330) target = $region56
      $region55: #{ppo_actor_forward.1} parent=51 // pred_region
        %s333 = smul.u32 16, %s17
        %p334 = scmp.lt.s32.totalorder %s333, 31
        %s335 = scalar_select %p334, %s333, 31
        %s336 = smul.addr %s335, 8
        %s337 = scalar_lea.vmem %s0, %s336
        %s338 = smul.u32 16, %s17
      $region56: #{ppo_actor_forward.1} parent=51 // pred_fallthru
        _
      // Predicated region
      $region57: #{ppo_actor_forward.1} parent=51 // pred_check
        %p339 = pneg %p63
      $region58: #{ppo_actor_forward.1} parent=51 // pred_check_branch
        %341 = sbr.rel (%p339) target = $region60
      $region59: #{ppo_actor_forward.1} parent=51 // pred_region
        %s342 = smul.u32 16, %s17
        %p343 = scmp.lt.s32.totalorder %s342, 31
        %s344 = scalar_select %p343, %s342, 31
        %s345 = smul.addr %s344, 8
        %s346 = scalar_lea.vmem %s1, %s345
        %s347 = smul.u32 16, %s17
      $region60: #{ppo_actor_forward.1} parent=51 // pred_fallthru
        _
    $region52: #{ppo_actor_forward.1} parent=5 // pred_fallthru
      _
    %p348 = scmp.le.s32.totalorder 1, %s17
    %p349 = scmp.lt.s32.totalorder %s17, 3
    %p350 = pnand %p348, %p349
    %p351 = pneg %p350
    // Predicated region
    $region61: #{ppo_actor_forward.1} parent=5 // pred_check
      _
    $region62: #{ppo_actor_forward.1} parent=5 // pred_check_branch
      %353 = sbr.rel (%p350) target = $region64
    $region63: #{ppo_actor_forward.1} parent=5 // pred_region
      %s354 = ssub.s32 %s17, 1
      %s355 = smul.u32 16, %s22
      %p356 = scmp.lt.s32.totalorder %s355, 31
      %s357 = scalar_select %p356, %s355, 31
      %s358 = smul.addr %s357, 8
      %s359 = scalar_lea.vmem %s0, %s358
      %p360 = pneg %p43
      %p361 = pneg %p40
      %s362 = smul.u32 16, %s22
      %p363 = scmp.lt.s32.totalorder %s362, 31
      %s364 = scalar_select %p363, %s362, 31
      %s365 = smul.addr %s364, 8
      %s366 = scalar_lea.vmem %s1, %s365
      %p367 = pneg %p69
      %p368 = pneg %p66
      %p369 = pneg %p90
      %p370 = pneg %p87
      %p371 = pneg %p111
      %p372 = pneg %p108
      %p373 = pneg %p132
      %p374 = pneg %p129
      %p375 = pneg %p153
      %p376 = pneg %p150
      %p377 = pneg %p174
      %p378 = pneg %p171
      %p379 = pneg %p195
      %p380 = pneg %p192
      %p381 = pneg %p216
      %p382 = pneg %p213
      %p383 = pneg %p237
      %p384 = pneg %p234
      %p385 = pneg %p258
      %p386 = pneg %p255
      %p387 = pneg %p284
      %p388 = pneg %p281
      %s389 = smul.u32 16, %s22
      %p390 = scmp.lt.s32.totalorder %s389, 31
      %s391 = scalar_select %p390, %s389, 31
      %s392 = smul.addr %s391, 8
      %s393 = scalar_lea.vmem %s11, %s392
      %s394 = smul.u32 16, %s22
      %p395 = scmp.lt.s32.totalorder %s394, 31
      %s396 = scalar_select %p395, %s394, 31
      %s397 = smul.addr %s396, 8
      %s398 = scalar_lea.vmem %s0, %s397
      %s399 = smul.u32 16, %s22
      %s400 = smul.u32 16, %s22
      %p401 = scmp.lt.s32.totalorder %s400, 31
      %s402 = scalar_select %p401, %s400, 31
      %s403 = smul.addr %s402, 8
      %s404 = scalar_lea.vmem %s1, %s403
      %s405 = smul.u32 16, %s22
      %s406 = smul.u32 16, %s22
      %p407 = scmp.lt.s32.totalorder %s406, 31
      %s408 = scalar_select %p407, %s406, 31
      %s409 = smul.addr %s408, 8
      %s410 = scalar_lea.vmem %s11, %s409
      %s411 = smul.u32 16, %s22
      %v412 = vld [vmem:[%s398] sm:$0xff]
      %v413 = vld [vmem:[%s398 + $0x8] sm:$0xff]
      %v414 = vld [vmem:[%s398 + $0x10] sm:$0xff]
      %v415 = vld [vmem:[%s398 + $0x18] sm:$0xff]
      %v416 = vld [vmem:[%s398 + $0x20] sm:$0xff]
      %v417 = vld [vmem:[%s398 + $0x28] sm:$0xff]
      %v418 = vld [vmem:[%s398 + $0x30] sm:$0xff]
      %v419 = vld [vmem:[%s398 + $0x38] sm:$0xff]
      %v420 = vld [vmem:[%s398 + $0x40] sm:$0xff]
      %v421 = vld [vmem:[%s398 + $0x48] sm:$0xff]
      %v422 = vld [vmem:[%s398 + $0x50] sm:$0xff]
      %v423 = vld [vmem:[%s398 + $0x58] sm:$0xff]
      %v424 = vld [vmem:[%s398 + $0x60] sm:$0xff]
      %v425 = vld [vmem:[%s398 + $0x68] sm:$0xff]
      %v426 = vld [vmem:[%s398 + $0x70] sm:$0xff]
      %v427 = vld [vmem:[%s398 + $0x78] sm:$0xff]
      %v428 = vld [vmem:[%s2] sm:$0xff]
      %v429 = vld [vmem:[%s2 + $0x8] sm:$0xff]
      %v430 = vld [vmem:[%s2 + $0x10] sm:$0xff]
      %v431 = vld [vmem:[%s2 + $0x18] sm:$0xff]
      %v432 = vld [vmem:[%s2 + $0x20] sm:$0xff]
      %v433 = vld [vmem:[%s2 + $0x28] sm:$0xff]
      %v434 = vld [vmem:[%s2 + $0x30] sm:$0xff]
      %v435 = vld [vmem:[%s2 + $0x38] sm:$0xff]
      %v436 = vld [vmem:[%s3] sm:$0x1]
      %v438 = vlaneseq
      %v439 = vshrl.u32 %v438, 7
      %v440 = vsub.s32 0, %v439
      %v441 = vrot.slane %v436, %v440
      %vm443 = vcmask 261120
      %v445 = vsel %vm443, %v412, 0
      %v448 = vsel %vm443, %v413, 0
      %v451 = vsel %vm443, %v414, 0
      %v454 = vsel %vm443, %v415, 0
      %v457 = vsel %vm443, %v416, 0
      %v460 = vsel %vm443, %v417, 0
      %v463 = vsel %vm443, %v418, 0
      %v466 = vsel %vm443, %v419, 0
      %v469 = vsel %vm443, %v420, 0
      %v472 = vsel %vm443, %v421, 0
      %v475 = vsel %vm443, %v422, 0
      %v478 = vsel %vm443, %v423, 0
      %v481 = vsel %vm443, %v424, 0
      %v484 = vsel %vm443, %v425, 0
      %v487 = vsel %vm443, %v426, 0
      %v490 = vsel %vm443, %v427, 0
      %v493 = vsel %vm443, %v428, 0
      %v496 = vsel %vm443, %v429, 0
      %v499 = vsel %vm443, %v430, 0
      %v502 = vsel %vm443, %v431, 0
      %v505 = vsel %vm443, %v432, 0
      %v508 = vsel %vm443, %v433, 0
      %v511 = vsel %vm443, %v434, 0
      %v514 = vsel %vm443, %v435, 0
      %516 = vmatprep.subr.mxu0 0.0
      %517 = vmatpush1.xpose.msra.mxu0 0.0
      %518 = vmatprep.subr.mxu0 0.0
      %519 = vmatpush1.xpose.msra.mxu0 0.0
      %520 = vmatprep.subr.mxu0 0.0
      %521 = vmatpush1.xpose.msra.mxu0 0.0
      %522 = vmatprep.subr.mxu0 0.0
      %523 = vmatpush1.xpose.msra.mxu0 0.0
      %524 = vmatprep.subr.mxu0 0.0
      %525 = vmatpush1.xpose.msra.mxu0 0.0
      %526 = vmatprep.subr.mxu0 0.0
      %527 = vmatpush1.xpose.msra.mxu0 0.0
      %528 = vmatprep.subr.mxu0 0.0
      %529 = vmatpush1.xpose.msra.mxu0 0.0
      %530 = vmatprep.subr.mxu0 0.0
      %531 = vmatpush1.xpose.msra.mxu0 0.0
      %532 = vmatprep.subr.mxu0 0.0
      %533 = vmatpush1.xpose.msra.mxu0 %v514
      %534 = vmatprep.subr.mxu0 0.0
      %535 = vmatpush1.xpose.msra.mxu0 %v511
      %536 = vmatprep.subr.mxu0 0.0
      %537 = vmatpush1.xpose.msra.mxu0 %v508
      %538 = vmatprep.subr.mxu0 0.0
      %539 = vmatpush1.xpose.msra.mxu0 %v505
      %540 = vmatprep.subr.mxu0 0.0
      %541 = vmatpush1.xpose.msra.mxu0 %v502
      %542 = vmatprep.subr.mxu0 0.0
      %543 = vmatpush1.xpose.msra.mxu0 %v499
      %544 = vmatprep.subr.mxu0 0.0
      %545 = vmatpush1.xpose.msra.mxu0 %v496
      %546 = vmatprep.subr.mxu0 0.0
      %547 = vmatpush1.xpose.msra.mxu0 %v493
      %548 = vmatprep.subr.mxu0 0.0
      %549 = vmatpush2.xpose.msra.mxu0 0.0
      %550 = vmatprep.subr.mxu0 0.0
      %551 = vmatpush2.xpose.msra.mxu0 0.0
      %552 = vmatprep.subr.mxu0 0.0
      %553 = vmatpush2.xpose.msra.mxu0 0.0
      %554 = vmatprep.subr.mxu0 0.0
      %555 = vmatpush2.xpose.msra.mxu0 0.0
      %556 = vmatprep.subr.mxu0 0.0
      %557 = vmatpush2.xpose.msra.mxu0 0.0
      %558 = vmatprep.subr.mxu0 0.0
      %559 = vmatpush2.xpose.msra.mxu0 0.0
      %560 = vmatprep.subr.mxu0 0.0
      %561 = vmatpush2.xpose.msra.mxu0 0.0
      %562 = vmatprep.subr.mxu0 0.0
      %563 = vmatpush2.xpose.msra.mxu0 0.0
      %564 = vmatprep.subr.mxu0 0.0
      %565 = vmatpush2.xpose.msra.mxu0 0.0
      %566 = vmatprep.subr.mxu0 0.0
      %567 = vmatpush2.xpose.msra.mxu0 0.0
      %568 = vmatprep.subr.mxu0 0.0
      %569 = vmatpush2.xpose.msra.mxu0 0.0
      %570 = vmatprep.subr.mxu0 0.0
      %571 = vmatpush2.xpose.msra.mxu0 0.0
      %572 = vmatprep.subr.mxu0 0.0
      %573 = vmatpush2.xpose.msra.mxu0 0.0
      %574 = vmatprep.subr.mxu0 0.0
      %575 = vmatpush2.xpose.msra.mxu0 0.0
      %576 = vmatprep.subr.mxu0 0.0
      %577 = vmatpush2.xpose.msra.mxu0 0.0
      %578 = vmatprep.subr.mxu0 0.0
      %579 = vmatpush2.xpose.msra.mxu0 0.0
      %580 = vmatprep.mubr.f32.mxu0 0.0
      %581 = vmatmul.mubr.f32.gmra.mxu0 %v445
      %v582 = vpop.f32.mrf.mxu0
      %v583 = vadd.f32 %v441, %v582
      %v584 = vpop.f32.mrf.mxu0
      %585 = vmatprep.mubr.f32.mxu0 0.0
      %586 = vmatmul.mubr.f32.gmra.mxu0 %v448
      %v587 = vpop.f32.mrf.mxu0
      %v588 = vadd.f32 %v441, %v587
      %v589 = vpop.f32.mrf.mxu0
      %590 = vmatprep.mubr.f32.mxu0 0.0
      %591 = vmatmul.mubr.f32.gmra.mxu0 %v451
      %v592 = vpop.f32.mrf.mxu0
      %v593 = vadd.f32 %v441, %v592
      %v594 = vpop.f32.mrf.mxu0
      %595 = vmatprep.mubr.f32.mxu0 0.0
      %596 = vmatmul.mubr.f32.gmra.mxu0 %v454
      %v597 = vpop.f32.mrf.mxu0
      %v598 = vadd.f32 %v441, %v597
      %v599 = vpop.f32.mrf.mxu0
      %600 = vmatprep.mubr.f32.mxu0 0.0
      %601 = vmatmul.mubr.f32.gmra.mxu0 %v457
      %v602 = vpop.f32.mrf.mxu0
      %v603 = vadd.f32 %v441, %v602
      %v604 = vpop.f32.mrf.mxu0
      %605 = vmatprep.mubr.f32.mxu0 0.0
      %606 = vmatmul.mubr.f32.gmra.mxu0 %v460
      %v607 = vpop.f32.mrf.mxu0
      %v608 = vadd.f32 %v441, %v607
      %v609 = vpop.f32.mrf.mxu0
      %610 = vmatprep.mubr.f32.mxu0 0.0
      %611 = vmatmul.mubr.f32.gmra.mxu0 %v463
      %v612 = vpop.f32.mrf.mxu0
      %v613 = vadd.f32 %v441, %v612
      %v614 = vpop.f32.mrf.mxu0
      %615 = vmatprep.mubr.f32.mxu0 0.0
      %616 = vmatmul.mubr.f32.gmra.mxu0 %v466
      %v617 = vpop.f32.mrf.mxu0
      %v618 = vadd.f32 %v441, %v617
      %v619 = vpop.f32.mrf.mxu0
      %620 = vmatprep.mubr.f32.mxu0 0.0
      %621 = vmatmul.mubr.f32.gmra.mxu0 %v469
      %v622 = vpop.f32.mrf.mxu0
      %v623 = vadd.f32 %v441, %v622
      %v624 = vpop.f32.mrf.mxu0
      %625 = vmatprep.mubr.f32.mxu0 0.0
      %626 = vmatmul.mubr.f32.gmra.mxu0 %v472
      %v627 = vpop.f32.mrf.mxu0
      %v628 = vadd.f32 %v441, %v627
      %v629 = vpop.f32.mrf.mxu0
      %630 = vmatprep.mubr.f32.mxu0 0.0
      %631 = vmatmul.mubr.f32.gmra.mxu0 %v475
      %v632 = vpop.f32.mrf.mxu0
      %v633 = vadd.f32 %v441, %v632
      %v634 = vpop.f32.mrf.mxu0
      %635 = vmatprep.mubr.f32.mxu0 0.0
      %636 = vmatmul.mubr.f32.gmra.mxu0 %v478
      %v637 = vpop.f32.mrf.mxu0
      %v638 = vadd.f32 %v441, %v637
      %v639 = vpop.f32.mrf.mxu0
      %640 = vmatprep.mubr.f32.mxu0 0.0
      %641 = vmatmul.mubr.f32.gmra.mxu0 %v481
      %v642 = vpop.f32.mrf.mxu0
      %v643 = vadd.f32 %v441, %v642
      %v644 = vpop.f32.mrf.mxu0
      %645 = vmatprep.mubr.f32.mxu0 0.0
      %646 = vmatmul.mubr.f32.gmra.mxu0 %v484
      %v647 = vpop.f32.mrf.mxu0
      %v648 = vadd.f32 %v441, %v647
      %v649 = vpop.f32.mrf.mxu0
      %650 = vmatprep.mubr.f32.mxu0 0.0
      %651 = vmatmul.mubr.f32.gmra.mxu0 %v487
      %v652 = vpop.f32.mrf.mxu0
      %v653 = vadd.f32 %v441, %v652
      %v654 = vpop.f32.mrf.mxu0
      %655 = vmatprep.mubr.f32.mxu0 0.0
      %656 = vmatmul.mubr.f32.gmra.mxu0 %v490
      %v657 = vpop.f32.mrf.mxu0
      %v658 = vadd.f32 %v441, %v657
      %v659 = vpop.f32.mrf.mxu0
      %660 = vdwg.mxu0
      %v661 = vmax.f32 %v583, 0.0
      %v662 = vmax.f32 %v588, 0.0
      %v663 = vmax.f32 %v593, 0.0
      %v664 = vmax.f32 %v598, 0.0
      %v665 = vmax.f32 %v603, 0.0
      %v666 = vmax.f32 %v608, 0.0
      %v667 = vmax.f32 %v613, 0.0
      %v668 = vmax.f32 %v618, 0.0
      %v669 = vmax.f32 %v623, 0.0
      %v670 = vmax.f32 %v628, 0.0
      %v671 = vmax.f32 %v633, 0.0
      %v672 = vmax.f32 %v638, 0.0
      %v673 = vmax.f32 %v643, 0.0
      %v674 = vmax.f32 %v648, 0.0
      %v675 = vmax.f32 %v653, 0.0
      %v676 = vmax.f32 %v658, 0.0
      %v677 = vld [vmem:[%s4] sm:$0xff]
      %v678 = vld [vmem:[%s4 + $0x8] sm:$0xff]
      %v679 = vld [vmem:[%s4 + $0x10] sm:$0xff]
      %v680 = vld [vmem:[%s4 + $0x18] sm:$0xff]
      %v681 = vld [vmem:[%s5] sm:$0x1]
      %v683 = vlaneseq
      %v684 = vshrl.u32 %v683, 7
      %v685 = vsub.s32 0, %v684
      %v686 = vrot.slane %v681, %v685
      %vm688 = vcmask 523264
      %v690 = vsel %vm688, %v661, 0
      %v693 = vsel %vm688, %v662, 0
      %v696 = vsel %vm688, %v663, 0
      %v699 = vsel %vm688, %v664, 0
      %v702 = vsel %vm688, %v665, 0
      %v705 = vsel %vm688, %v666, 0
      %v708 = vsel %vm688, %v667, 0
      %v711 = vsel %vm688, %v668, 0
      %v714 = vsel %vm688, %v669, 0
      %v717 = vsel %vm688, %v670, 0
      %v720 = vsel %vm688, %v671, 0
      %v723 = vsel %vm688, %v672, 0
      %v726 = vsel %vm688, %v673, 0
      %v729 = vsel %vm688, %v674, 0
      %v732 = vsel %vm688, %v675, 0
      %v735 = vsel %vm688, %v676, 0
      %v738 = vsel %vm688, %v677, 0
      %v741 = vsel %vm688, %v678, 0
      %v744 = vsel %vm688, %v679, 0
      %v747 = vsel %vm688, %v680, 0
      %749 = vmatprep.subr.mxu0 0.0
      %750 = vmatpush1.xpose.msra.mxu0 0.0
      %751 = vmatprep.subr.mxu0 0.0
      %752 = vmatpush1.xpose.msra.mxu0 0.0
      %753 = vmatprep.subr.mxu0 0.0
      %754 = vmatpush1.xpose.msra.mxu0 0.0
      %755 = vmatprep.subr.mxu0 0.0
      %756 = vmatpush1.xpose.msra.mxu0 0.0
      %757 = vmatprep.subr.mxu0 0.0
      %758 = vmatpush1.xpose.msra.mxu0 0.0
      %759 = vmatprep.subr.mxu0 0.0
      %760 = vmatpush1.xpose.msra.mxu0 0.0
      %761 = vmatprep.subr.mxu0 0.0
      %762 = vmatpush1.xpose.msra.mxu0 0.0
      %763 = vmatprep.subr.mxu0 0.0
      %764 = vmatpush1.xpose.msra.mxu0 0.0
      %765 = vmatprep.subr.mxu0 0.0
      %766 = vmatpush1.xpose.msra.mxu0 0.0
      %767 = vmatprep.subr.mxu0 0.0
      %768 = vmatpush1.xpose.msra.mxu0 0.0
      %769 = vmatprep.subr.mxu0 0.0
      %770 = vmatpush1.xpose.msra.mxu0 0.0
      %771 = vmatprep.subr.mxu0 0.0
      %772 = vmatpush1.xpose.msra.mxu0 0.0
      %773 = vmatprep.subr.mxu0 0.0
      %774 = vmatpush1.xpose.msra.mxu0 %v747
      %775 = vmatprep.subr.mxu0 0.0
      %776 = vmatpush1.xpose.msra.mxu0 %v744
      %777 = vmatprep.subr.mxu0 0.0
      %778 = vmatpush1.xpose.msra.mxu0 %v741
      %779 = vmatprep.subr.mxu0 0.0
      %780 = vmatpush1.xpose.msra.mxu0 %v738
      %781 = vmatprep.subr.mxu0 0.0
      %782 = vmatpush2.xpose.msra.mxu0 0.0
      %783 = vmatprep.subr.mxu0 0.0
      %784 = vmatpush2.xpose.msra.mxu0 0.0
      %785 = vmatprep.subr.mxu0 0.0
      %786 = vmatpush2.xpose.msra.mxu0 0.0
      %787 = vmatprep.subr.mxu0 0.0
      %788 = vmatpush2.xpose.msra.mxu0 0.0
      %789 = vmatprep.subr.mxu0 0.0
      %790 = vmatpush2.xpose.msra.mxu0 0.0
      %791 = vmatprep.subr.mxu0 0.0
      %792 = vmatpush2.xpose.msra.mxu0 0.0
      %793 = vmatprep.subr.mxu0 0.0
      %794 = vmatpush2.xpose.msra.mxu0 0.0
      %795 = vmatprep.subr.mxu0 0.0
      %796 = vmatpush2.xpose.msra.mxu0 0.0
      %797 = vmatprep.subr.mxu0 0.0
      %798 = vmatpush2.xpose.msra.mxu0 0.0
      %799 = vmatprep.subr.mxu0 0.0
      %800 = vmatpush2.xpose.msra.mxu0 0.0
      %801 = vmatprep.subr.mxu0 0.0
      %802 = vmatpush2.xpose.msra.mxu0 0.0
      %803 = vmatprep.subr.mxu0 0.0
      %804 = vmatpush2.xpose.msra.mxu0 0.0
      %805 = vmatprep.subr.mxu0 0.0
      %806 = vmatpush2.xpose.msra.mxu0 0.0
      %807 = vmatprep.subr.mxu0 0.0
      %808 = vmatpush2.xpose.msra.mxu0 0.0
      %809 = vmatprep.subr.mxu0 0.0
      %810 = vmatpush2.xpose.msra.mxu0 0.0
      %811 = vmatprep.subr.mxu0 0.0
      %812 = vmatpush2.xpose.msra.mxu0 0.0
      %813 = vmatprep.mubr.f32.mxu0 0.0
      %814 = vmatmul.mubr.f32.gmra.mxu0 %v690
      %v815 = vpop.f32.mrf.mxu0
      %v816 = vadd.f32 %v686, %v815
      %v817 = vpop.f32.mrf.mxu0
      %818 = vmatprep.mubr.f32.mxu0 0.0
      %819 = vmatmul.mubr.f32.gmra.mxu0 %v693
      %v820 = vpop.f32.mrf.mxu0
      %v821 = vadd.f32 %v686, %v820
      %v822 = vpop.f32.mrf.mxu0
      %823 = vmatprep.mubr.f32.mxu0 0.0
      %824 = vmatmul.mubr.f32.gmra.mxu0 %v696
      %v825 = vpop.f32.mrf.mxu0
      %v826 = vadd.f32 %v686, %v825
      %v827 = vpop.f32.mrf.mxu0
      %828 = vmatprep.mubr.f32.mxu0 0.0
      %829 = vmatmul.mubr.f32.gmra.mxu0 %v699
      %v830 = vpop.f32.mrf.mxu0
      %v831 = vadd.f32 %v686, %v830
      %v832 = vpop.f32.mrf.mxu0
      %833 = vmatprep.mubr.f32.mxu0 0.0
      %834 = vmatmul.mubr.f32.gmra.mxu0 %v702
      %v835 = vpop.f32.mrf.mxu0
      %v836 = vadd.f32 %v686, %v835
      %v837 = vpop.f32.mrf.mxu0
      %838 = vmatprep.mubr.f32.mxu0 0.0
      %839 = vmatmul.mubr.f32.gmra.mxu0 %v705
      %v840 = vpop.f32.mrf.mxu0
      %v841 = vadd.f32 %v686, %v840
      %v842 = vpop.f32.mrf.mxu0
      %843 = vmatprep.mubr.f32.mxu0 0.0
      %844 = vmatmul.mubr.f32.gmra.mxu0 %v708
      %v845 = vpop.f32.mrf.mxu0
      %v846 = vadd.f32 %v686, %v845
      %v847 = vpop.f32.mrf.mxu0
      %848 = vmatprep.mubr.f32.mxu0 0.0
      %849 = vmatmul.mubr.f32.gmra.mxu0 %v711
      %v850 = vpop.f32.mrf.mxu0
      %v851 = vadd.f32 %v686, %v850
      %v852 = vpop.f32.mrf.mxu0
      %853 = vmatprep.mubr.f32.mxu0 0.0
      %854 = vmatmul.mubr.f32.gmra.mxu0 %v714
      %v855 = vpop.f32.mrf.mxu0
      %v856 = vadd.f32 %v686, %v855
      %v857 = vpop.f32.mrf.mxu0
      %858 = vmatprep.mubr.f32.mxu0 0.0
      %859 = vmatmul.mubr.f32.gmra.mxu0 %v717
      %v860 = vpop.f32.mrf.mxu0
      %v861 = vadd.f32 %v686, %v860
      %v862 = vpop.f32.mrf.mxu0
      %863 = vmatprep.mubr.f32.mxu0 0.0
      %864 = vmatmul.mubr.f32.gmra.mxu0 %v720
      %v865 = vpop.f32.mrf.mxu0
      %v866 = vadd.f32 %v686, %v865
      %v867 = vpop.f32.mrf.mxu0
      %868 = vmatprep.mubr.f32.mxu0 0.0
      %869 = vmatmul.mubr.f32.gmra.mxu0 %v723
      %v870 = vpop.f32.mrf.mxu0
      %v871 = vadd.f32 %v686, %v870
      %v872 = vpop.f32.mrf.mxu0
      %873 = vmatprep.mubr.f32.mxu0 0.0
      %874 = vmatmul.mubr.f32.gmra.mxu0 %v726
      %v875 = vpop.f32.mrf.mxu0
      %v876 = vadd.f32 %v686, %v875
      %v877 = vpop.f32.mrf.mxu0
      %878 = vmatprep.mubr.f32.mxu0 0.0
      %879 = vmatmul.mubr.f32.gmra.mxu0 %v729
      %v880 = vpop.f32.mrf.mxu0
      %v881 = vadd.f32 %v686, %v880
      %v882 = vpop.f32.mrf.mxu0
      %883 = vmatprep.mubr.f32.mxu0 0.0
      %884 = vmatmul.mubr.f32.gmra.mxu0 %v732
      %v885 = vpop.f32.mrf.mxu0
      %v886 = vadd.f32 %v686, %v885
      %v887 = vpop.f32.mrf.mxu0
      %888 = vmatprep.mubr.f32.mxu0 0.0
      %889 = vmatmul.mubr.f32.gmra.mxu0 %v735
      %v890 = vpop.f32.mrf.mxu0
      %v891 = vadd.f32 %v686, %v890
      %v892 = vpop.f32.mrf.mxu0
      %893 = vdwg.mxu0
      %v894 = vmax.f32 %v816, 0.0
      %v895 = vmax.f32 %v821, 0.0
      %v896 = vmax.f32 %v826, 0.0
      %v897 = vmax.f32 %v831, 0.0
      %v898 = vmax.f32 %v836, 0.0
      %v899 = vmax.f32 %v841, 0.0
      %v900 = vmax.f32 %v846, 0.0
      %v901 = vmax.f32 %v851, 0.0
      %v902 = vmax.f32 %v856, 0.0
      %v903 = vmax.f32 %v861, 0.0
      %v904 = vmax.f32 %v866, 0.0
      %v905 = vmax.f32 %v871, 0.0
      %v906 = vmax.f32 %v876, 0.0
      %v907 = vmax.f32 %v881, 0.0
      %v908 = vmax.f32 %v886, 0.0
      %v909 = vmax.f32 %v891, 0.0
      %v910 = vld [vmem:[%s6] sm:$0xff]
      %v911 = vld [vmem:[%s6 + $0x8] sm:$0xff]
      %v912 = vld [vmem:[%s6 + $0x10] sm:$0xff]
      %v913 = vld [vmem:[%s6 + $0x18] sm:$0xff]
      %v914 = vld [vmem:[%s7] sm:$0x1]
      %v916 = vlaneseq
      %v917 = vshrl.u32 %v916, 7
      %v918 = vsub.s32 0, %v917
      %v919 = vrot.slane %v914, %v918
      %v922 = vsel %vm443, %v894, 0
      %v925 = vsel %vm443, %v895, 0
      %v928 = vsel %vm443, %v896, 0
      %v931 = vsel %vm443, %v897, 0
      %v934 = vsel %vm443, %v898, 0
      %v937 = vsel %vm443, %v899, 0
      %v940 = vsel %vm443, %v900, 0
      %v943 = vsel %vm443, %v901, 0
      %v946 = vsel %vm443, %v902, 0
      %v949 = vsel %vm443, %v903, 0
      %v952 = vsel %vm443, %v904, 0
      %v955 = vsel %vm443, %v905, 0
      %v958 = vsel %vm443, %v906, 0
      %v961 = vsel %vm443, %v907, 0
      %v964 = vsel %vm443, %v908, 0
      %v967 = vsel %vm443, %v909, 0
      %v970 = vsel %vm443, %v910, 0
      %v973 = vsel %vm443, %v911, 0
      %v976 = vsel %vm443, %v912, 0
      %v979 = vsel %vm443, %v913, 0
      %981 = vmatprep.subr.mxu0 0.0
      %982 = vmatpush1.xpose.msra.mxu0 0.0
      %983 = vmatprep.subr.mxu0 0.0
      %984 = vmatpush1.xpose.msra.mxu0 0.0
      %985 = vmatprep.subr.mxu0 0.0
      %986 = vmatpush1.xpose.msra.mxu0 0.0
      %987 = vmatprep.subr.mxu0 0.0
      %988 = vmatpush1.xpose.msra.mxu0 0.0
      %989 = vmatprep.subr.mxu0 0.0
      %990 = vmatpush1.xpose.msra.mxu0 0.0
      %991 = vmatprep.subr.mxu0 0.0
      %992 = vmatpush1.xpose.msra.mxu0 0.0
      %993 = vmatprep.subr.mxu0 0.0
      %994 = vmatpush1.xpose.msra.mxu0 0.0
      %995 = vmatprep.subr.mxu0 0.0
      %996 = vmatpush1.xpose.msra.mxu0 0.0
      %997 = vmatprep.subr.mxu0 0.0
      %998 = vmatpush1.xpose.msra.mxu0 0.0
      %999 = vmatprep.subr.mxu0 0.0
      %1000 = vmatpush1.xpose.msra.mxu0 0.0
      %1001 = vmatprep.subr.mxu0 0.0
      %1002 = vmatpush1.xpose.msra.mxu0 0.0
      %1003 = vmatprep.subr.mxu0 0.0
      %1004 = vmatpush1.xpose.msra.mxu0 0.0
      %1005 = vmatprep.subr.mxu0 0.0
      %1006 = vmatpush1.xpose.msra.mxu0 %v979
      %1007 = vmatprep.subr.mxu0 0.0
      %1008 = vmatpush1.xpose.msra.mxu0 %v976
      %1009 = vmatprep.subr.mxu0 0.0
      %1010 = vmatpush1.xpose.msra.mxu0 %v973
      %1011 = vmatprep.subr.mxu0 0.0
      %1012 = vmatpush1.xpose.msra.mxu0 %v970
      %1013 = vmatprep.subr.mxu0 0.0
      %1014 = vmatpush2.xpose.msra.mxu0 0.0
      %1015 = vmatprep.subr.mxu0 0.0
      %1016 = vmatpush2.xpose.msra.mxu0 0.0
      %1017 = vmatprep.subr.mxu0 0.0
      %1018 = vmatpush2.xpose.msra.mxu0 0.0
      %1019 = vmatprep.subr.mxu0 0.0
      %1020 = vmatpush2.xpose.msra.mxu0 0.0
      %1021 = vmatprep.subr.mxu0 0.0
      %1022 = vmatpush2.xpose.msra.mxu0 0.0
      %1023 = vmatprep.subr.mxu0 0.0
      %1024 = vmatpush2.xpose.msra.mxu0 0.0
      %1025 = vmatprep.subr.mxu0 0.0
      %1026 = vmatpush2.xpose.msra.mxu0 0.0
      %1027 = vmatprep.subr.mxu0 0.0
      %1028 = vmatpush2.xpose.msra.mxu0 0.0
      %1029 = vmatprep.subr.mxu0 0.0
      %1030 = vmatpush2.xpose.msra.mxu0 0.0
      %1031 = vmatprep.subr.mxu0 0.0
      %1032 = vmatpush2.xpose.msra.mxu0 0.0
      %1033 = vmatprep.subr.mxu0 0.0
      %1034 = vmatpush2.xpose.msra.mxu0 0.0
      %1035 = vmatprep.subr.mxu0 0.0
      %1036 = vmatpush2.xpose.msra.mxu0 0.0
      %1037 = vmatprep.subr.mxu0 0.0
      %1038 = vmatpush2.xpose.msra.mxu0 0.0
      %1039 = vmatprep.subr.mxu0 0.0
      %1040 = vmatpush2.xpose.msra.mxu0 0.0
      %1041 = vmatprep.subr.mxu0 0.0
      %1042 = vmatpush2.xpose.msra.mxu0 0.0
      %1043 = vmatprep.subr.mxu0 0.0
      %1044 = vmatpush2.xpose.msra.mxu0 0.0
      %1045 = vmatprep.mubr.f32.mxu0 0.0
      %1046 = vmatmul.mubr.f32.gmra.mxu0 %v922
      %v1047 = vpop.f32.mrf.mxu0
      %v1048 = vadd.f32 %v919, %v1047
      %v1049 = vpop.f32.mrf.mxu0
      %1050 = vmatprep.mubr.f32.mxu0 0.0
      %1051 = vmatmul.mubr.f32.gmra.mxu0 %v925
      %v1052 = vpop.f32.mrf.mxu0
      %v1053 = vadd.f32 %v919, %v1052
      %v1054 = vpop.f32.mrf.mxu0
      %1055 = vmatprep.mubr.f32.mxu0 0.0
      %1056 = vmatmul.mubr.f32.gmra.mxu0 %v928
      %v1057 = vpop.f32.mrf.mxu0
      %v1058 = vadd.f32 %v919, %v1057
      %v1059 = vpop.f32.mrf.mxu0
      %1060 = vmatprep.mubr.f32.mxu0 0.0
      %1061 = vmatmul.mubr.f32.gmra.mxu0 %v931
      %v1062 = vpop.f32.mrf.mxu0
      %v1063 = vadd.f32 %v919, %v1062
      %v1064 = vpop.f32.mrf.mxu0
      %1065 = vmatprep.mubr.f32.mxu0 0.0
      %1066 = vmatmul.mubr.f32.gmra.mxu0 %v934
      %v1067 = vpop.f32.mrf.mxu0
      %v1068 = vadd.f32 %v919, %v1067
      %v1069 = vpop.f32.mrf.mxu0
      %1070 = vmatprep.mubr.f32.mxu0 0.0
      %1071 = vmatmul.mubr.f32.gmra.mxu0 %v937
      %v1072 = vpop.f32.mrf.mxu0
      %v1073 = vadd.f32 %v919, %v1072
      %v1074 = vpop.f32.mrf.mxu0
      %1075 = vmatprep.mubr.f32.mxu0 0.0
      %1076 = vmatmul.mubr.f32.gmra.mxu0 %v940
      %v1077 = vpop.f32.mrf.mxu0
      %v1078 = vadd.f32 %v919, %v1077
      %v1079 = vpop.f32.mrf.mxu0
      %1080 = vmatprep.mubr.f32.mxu0 0.0
      %1081 = vmatmul.mubr.f32.gmra.mxu0 %v943
      %v1082 = vpop.f32.mrf.mxu0
      %v1083 = vadd.f32 %v919, %v1082
      %v1084 = vpop.f32.mrf.mxu0
      %1085 = vmatprep.mubr.f32.mxu0 0.0
      %1086 = vmatmul.mubr.f32.gmra.mxu0 %v946
      %v1087 = vpop.f32.mrf.mxu0
      %v1088 = vadd.f32 %v919, %v1087
      %v1089 = vpop.f32.mrf.mxu0
      %1090 = vmatprep.mubr.f32.mxu0 0.0
      %1091 = vmatmul.mubr.f32.gmra.mxu0 %v949
      %v1092 = vpop.f32.mrf.mxu0
      %v1093 = vadd.f32 %v919, %v1092
      %v1094 = vpop.f32.mrf.mxu0
      %1095 = vmatprep.mubr.f32.mxu0 0.0
      %1096 = vmatmul.mubr.f32.gmra.mxu0 %v952
      %v1097 = vpop.f32.mrf.mxu0
      %v1098 = vadd.f32 %v919, %v1097
      %v1099 = vpop.f32.mrf.mxu0
      %1100 = vmatprep.mubr.f32.mxu0 0.0
      %1101 = vmatmul.mubr.f32.gmra.mxu0 %v955
      %v1102 = vpop.f32.mrf.mxu0
      %v1103 = vadd.f32 %v919, %v1102
      %v1104 = vpop.f32.mrf.mxu0
      %1105 = vmatprep.mubr.f32.mxu0 0.0
      %1106 = vmatmul.mubr.f32.gmra.mxu0 %v958
      %v1107 = vpop.f32.mrf.mxu0
      %v1108 = vadd.f32 %v919, %v1107
      %v1109 = vpop.f32.mrf.mxu0
      %1110 = vmatprep.mubr.f32.mxu0 0.0
      %1111 = vmatmul.mubr.f32.gmra.mxu0 %v961
      %v1112 = vpop.f32.mrf.mxu0
      %v1113 = vadd.f32 %v919, %v1112
      %v1114 = vpop.f32.mrf.mxu0
      %1115 = vmatprep.mubr.f32.mxu0 0.0
      %1116 = vmatmul.mubr.f32.gmra.mxu0 %v964
      %v1117 = vpop.f32.mrf.mxu0
      %v1118 = vadd.f32 %v919, %v1117
      %v1119 = vpop.f32.mrf.mxu0
      %1120 = vmatprep.mubr.f32.mxu0 0.0
      %1121 = vmatmul.mubr.f32.gmra.mxu0 %v967
      %v1122 = vpop.f32.mrf.mxu0
      %v1123 = vadd.f32 %v919, %v1122
      %v1124 = vpop.f32.mrf.mxu0
      %1125 = vdwg.mxu0
      %v1126 = vmax.f32 %v1048, 0.0
      %v1127 = vmax.f32 %v1053, 0.0
      %v1128 = vmax.f32 %v1058, 0.0
      %v1129 = vmax.f32 %v1063, 0.0
      %v1130 = vmax.f32 %v1068, 0.0
      %v1131 = vmax.f32 %v1073, 0.0
      %v1132 = vmax.f32 %v1078, 0.0
      %v1133 = vmax.f32 %v1083, 0.0
      %v1134 = vmax.f32 %v1088, 0.0
      %v1135 = vmax.f32 %v1093, 0.0
      %v1136 = vmax.f32 %v1098, 0.0
      %v1137 = vmax.f32 %v1103, 0.0
      %v1138 = vmax.f32 %v1108, 0.0
      %v1139 = vmax.f32 %v1113, 0.0
      %v1140 = vmax.f32 %v1118, 0.0
      %v1141 = vmax.f32 %v1123, 0.0
      %v1142 = vld [vmem:[%s8] sm:$0xff]
      %v1143 = vld [vmem:[%s9] sm:$0x1]
      %v1145 = vlaneseq
      %v1146 = vshrl.u32 %v1145, 7
      %v1147 = vsub.s32 0, %v1146
      %v1148 = vrot.slane %v1143, %v1147
      %v1151 = vsel %vm443, %v1126, 0
      %v1154 = vsel %vm443, %v1127, 0
      %v1157 = vsel %vm443, %v1128, 0
      %v1160 = vsel %vm443, %v1129, 0
      %v1163 = vsel %vm443, %v1130, 0
      %v1166 = vsel %vm443, %v1131, 0
      %v1169 = vsel %vm443, %v1132, 0
      %v1172 = vsel %vm443, %v1133, 0
      %v1175 = vsel %vm443, %v1134, 0
      %v1178 = vsel %vm443, %v1135, 0
      %v1181 = vsel %vm443, %v1136, 0
      %v1184 = vsel %vm443, %v1137, 0
      %v1187 = vsel %vm443, %v1138, 0
      %v1190 = vsel %vm443, %v1139, 0
      %v1193 = vsel %vm443, %v1140, 0
      %v1196 = vsel %vm443, %v1141, 0
      %v1199 = vsel %vm443, %v1142, 0
      %1201 = vmatprep.subr.mxu0 0.0
      %1202 = vmatpush1.xpose.msra.mxu0 0.0
      %1203 = vmatprep.subr.mxu0 0.0
      %1204 = vmatpush1.xpose.msra.mxu0 0.0
      %1205 = vmatprep.subr.mxu0 0.0
      %1206 = vmatpush1.xpose.msra.mxu0 0.0
      %1207 = vmatprep.subr.mxu0 0.0
      %1208 = vmatpush1.xpose.msra.mxu0 0.0
      %1209 = vmatprep.subr.mxu0 0.0
      %1210 = vmatpush1.xpose.msra.mxu0 0.0
      %1211 = vmatprep.subr.mxu0 0.0
      %1212 = vmatpush1.xpose.msra.mxu0 0.0
      %1213 = vmatprep.subr.mxu0 0.0
      %1214 = vmatpush1.xpose.msra.mxu0 0.0
      %1215 = vmatprep.subr.mxu0 0.0
      %1216 = vmatpush1.xpose.msra.mxu0 0.0
      %1217 = vmatprep.subr.mxu0 0.0
      %1218 = vmatpush1.xpose.msra.mxu0 0.0
      %1219 = vmatprep.subr.mxu0 0.0
      %1220 = vmatpush1.xpose.msra.mxu0 0.0
      %1221 = vmatprep.subr.mxu0 0.0
      %1222 = vmatpush1.xpose.msra.mxu0 0.0
      %1223 = vmatprep.subr.mxu0 0.0
      %1224 = vmatpush1.xpose.msra.mxu0 0.0
      %1225 = vmatprep.subr.mxu0 0.0
      %1226 = vmatpush1.xpose.msra.mxu0 0.0
      %1227 = vmatprep.subr.mxu0 0.0
      %1228 = vmatpush1.xpose.msra.mxu0 0.0
      %1229 = vmatprep.subr.mxu0 0.0
      %1230 = vmatpush1.xpose.msra.mxu0 0.0
      %1231 = vmatprep.subr.mxu0 0.0
      %1232 = vmatpush1.xpose.msra.mxu0 %v1199
      %1233 = vmatprep.subr.mxu0 0.0
      %1234 = vmatpush2.xpose.msra.mxu0 0.0
      %1235 = vmatprep.subr.mxu0 0.0
      %1236 = vmatpush2.xpose.msra.mxu0 0.0
      %1237 = vmatprep.subr.mxu0 0.0
      %1238 = vmatpush2.xpose.msra.mxu0 0.0
      %1239 = vmatprep.subr.mxu0 0.0
      %1240 = vmatpush2.xpose.msra.mxu0 0.0
      %1241 = vmatprep.subr.mxu0 0.0
      %1242 = vmatpush2.xpose.msra.mxu0 0.0
      %1243 = vmatprep.subr.mxu0 0.0
      %1244 = vmatpush2.xpose.msra.mxu0 0.0
      %1245 = vmatprep.subr.mxu0 0.0
      %1246 = vmatpush2.xpose.msra.mxu0 0.0
      %1247 = vmatprep.subr.mxu0 0.0
      %1248 = vmatpush2.xpose.msra.mxu0 0.0
      %1249 = vmatprep.subr.mxu0 0.0
      %1250 = vmatpush2.xpose.msra.mxu0 0.0
      %1251 = vmatprep.subr.mxu0 0.0
      %1252 = vmatpush2.xpose.msra.mxu0 0.0
      %1253 = vmatprep.subr.mxu0 0.0
      %1254 = vmatpush2.xpose.msra.mxu0 0.0
      %1255 = vmatprep.subr.mxu0 0.0
      %1256 = vmatpush2.xpose.msra.mxu0 0.0
      %1257 = vmatprep.subr.mxu0 0.0
      %1258 = vmatpush2.xpose.msra.mxu0 0.0
      %1259 = vmatprep.subr.mxu0 0.0
      %1260 = vmatpush2.xpose.msra.mxu0 0.0
      %1261 = vmatprep.subr.mxu0 0.0
      %1262 = vmatpush2.xpose.msra.mxu0 0.0
      %1263 = vmatprep.subr.mxu0 0.0
      %1264 = vmatpush2.xpose.msra.mxu0 0.0
      %1265 = vmatprep.mubr.f32.mxu0 0.0
      %1266 = vmatmul.mubr.f32.gmra.mxu0 %v1151
      %v1267 = vpop.f32.mrf.mxu0
      %v1268 = vadd.f32 %v1148, %v1267
      %v1269 = vpop.f32.mrf.mxu0
      %1270 = vmatprep.mubr.f32.mxu0 0.0
      %1271 = vmatmul.mubr.f32.gmra.mxu0 %v1154
      %v1272 = vpop.f32.mrf.mxu0
      %v1273 = vadd.f32 %v1148, %v1272
      %v1274 = vpop.f32.mrf.mxu0
      %1275 = vmatprep.mubr.f32.mxu0 0.0
      %1276 = vmatmul.mubr.f32.gmra.mxu0 %v1157
      %v1277 = vpop.f32.mrf.mxu0
      %v1278 = vadd.f32 %v1148, %v1277
      %v1279 = vpop.f32.mrf.mxu0
      %1280 = vmatprep.mubr.f32.mxu0 0.0
      %1281 = vmatmul.mubr.f32.gmra.mxu0 %v1160
      %v1282 = vpop.f32.mrf.mxu0
      %v1283 = vadd.f32 %v1148, %v1282
      %v1284 = vpop.f32.mrf.mxu0
      %1285 = vmatprep.mubr.f32.mxu0 0.0
      %1286 = vmatmul.mubr.f32.gmra.mxu0 %v1163
      %v1287 = vpop.f32.mrf.mxu0
      %v1288 = vadd.f32 %v1148, %v1287
      %v1289 = vpop.f32.mrf.mxu0
      %1290 = vmatprep.mubr.f32.mxu0 0.0
      %1291 = vmatmul.mubr.f32.gmra.mxu0 %v1166
      %v1292 = vpop.f32.mrf.mxu0
      %v1293 = vadd.f32 %v1148, %v1292
      %v1294 = vpop.f32.mrf.mxu0
      %1295 = vmatprep.mubr.f32.mxu0 0.0
      %1296 = vmatmul.mubr.f32.gmra.mxu0 %v1169
      %v1297 = vpop.f32.mrf.mxu0
      %v1298 = vadd.f32 %v1148, %v1297
      %v1299 = vpop.f32.mrf.mxu0
      %1300 = vmatprep.mubr.f32.mxu0 0.0
      %1301 = vmatmul.mubr.f32.gmra.mxu0 %v1172
      %v1302 = vpop.f32.mrf.mxu0
      %v1303 = vadd.f32 %v1148, %v1302
      %v1304 = vpop.f32.mrf.mxu0
      %1305 = vmatprep.mubr.f32.mxu0 0.0
      %1306 = vmatmul.mubr.f32.gmra.mxu0 %v1175
      %v1307 = vpop.f32.mrf.mxu0
      %v1308 = vadd.f32 %v1148, %v1307
      %v1309 = vpop.f32.mrf.mxu0
      %1310 = vmatprep.mubr.f32.mxu0 0.0
      %1311 = vmatmul.mubr.f32.gmra.mxu0 %v1178
      %v1312 = vpop.f32.mrf.mxu0
      %v1313 = vadd.f32 %v1148, %v1312
      %v1314 = vpop.f32.mrf.mxu0
      %1315 = vmatprep.mubr.f32.mxu0 0.0
      %1316 = vmatmul.mubr.f32.gmra.mxu0 %v1181
      %v1317 = vpop.f32.mrf.mxu0
      %v1318 = vadd.f32 %v1148, %v1317
      %v1319 = vpop.f32.mrf.mxu0
      %1320 = vmatprep.mubr.f32.mxu0 0.0
      %1321 = vmatmul.mubr.f32.gmra.mxu0 %v1184
      %v1322 = vpop.f32.mrf.mxu0
      %v1323 = vadd.f32 %v1148, %v1322
      %v1324 = vpop.f32.mrf.mxu0
      %1325 = vmatprep.mubr.f32.mxu0 0.0
      %1326 = vmatmul.mubr.f32.gmra.mxu0 %v1187
      %v1327 = vpop.f32.mrf.mxu0
      %v1328 = vadd.f32 %v1148, %v1327
      %v1329 = vpop.f32.mrf.mxu0
      %1330 = vmatprep.mubr.f32.mxu0 0.0
      %1331 = vmatmul.mubr.f32.gmra.mxu0 %v1190
      %v1332 = vpop.f32.mrf.mxu0
      %v1333 = vadd.f32 %v1148, %v1332
      %v1334 = vpop.f32.mrf.mxu0
      %1335 = vmatprep.mubr.f32.mxu0 0.0
      %1336 = vmatmul.mubr.f32.gmra.mxu0 %v1193
      %v1337 = vpop.f32.mrf.mxu0
      %v1338 = vadd.f32 %v1148, %v1337
      %v1339 = vpop.f32.mrf.mxu0
      %1340 = vmatprep.mubr.f32.mxu0 0.0
      %1341 = vmatmul.mubr.f32.gmra.mxu0 %v1196
      %v1342 = vpop.f32.mrf.mxu0
      %v1343 = vadd.f32 %v1148, %v1342
      %v1344 = vpop.f32.mrf.mxu0
      %1345 = vdwg.mxu0
      %v1346 = vld [vmem:[%s10] sm:$0x1]
      %v1347 = vld [vmem:[%s404] sm:$0xff]
      %v1348 = vld [vmem:[%s404 + $0x8] sm:$0xff]
      %v1349 = vld [vmem:[%s404 + $0x10] sm:$0xff]
      %v1350 = vld [vmem:[%s404 + $0x18] sm:$0xff]
      %v1351 = vld [vmem:[%s404 + $0x20] sm:$0xff]
      %v1352 = vld [vmem:[%s404 + $0x28] sm:$0xff]
      %v1353 = vld [vmem:[%s404 + $0x30] sm:$0xff]
      %v1354 = vld [vmem:[%s404 + $0x38] sm:$0xff]
      %v1355 = vld [vmem:[%s404 + $0x40] sm:$0xff]
      %v1356 = vld [vmem:[%s404 + $0x48] sm:$0xff]
      %v1357 = vld [vmem:[%s404 + $0x50] sm:$0xff]
      %v1358 = vld [vmem:[%s404 + $0x58] sm:$0xff]
      %v1359 = vld [vmem:[%s404 + $0x60] sm:$0xff]
      %v1360 = vld [vmem:[%s404 + $0x68] sm:$0xff]
      %v1361 = vld [vmem:[%s404 + $0x70] sm:$0xff]
      %v1362 = vld [vmem:[%s404 + $0x78] sm:$0xff]
      %v1364 = vlaneseq
      %v1365 = vshrl.u32 %v1364, 7
      %v1366 = vsub.s32 0, %v1365
      %v1367 = vrot.slane %v1346, %v1366
      %v1369 = vmul.f32 %v1367, %v1347
      %v1370 = vmul.f32 %v1367, %v1348
      %v1371 = vmul.f32 %v1367, %v1349
      %v1372 = vmul.f32 %v1367, %v1350
      %v1373 = vmul.f32 %v1367, %v1351
      %v1374 = vmul.f32 %v1367, %v1352
      %v1375 = vmul.f32 %v1367, %v1353
      %v1376 = vmul.f32 %v1367, %v1354
      %v1377 = vmul.f32 %v1367, %v1355
      %v1378 = vmul.f32 %v1367, %v1356
      %v1379 = vmul.f32 %v1367, %v1357
      %v1380 = vmul.f32 %v1367, %v1358
      %v1381 = vmul.f32 %v1367, %v1359
      %v1382 = vmul.f32 %v1367, %v1360
      %v1383 = vmul.f32 %v1367, %v1361
      %v1384 = vmul.f32 %v1367, %v1362
      %v1385 = vadd.f32 %v1268, %v1369
      %v1386 = vadd.f32 %v1273, %v1370
      %v1387 = vadd.f32 %v1278, %v1371
      %v1388 = vadd.f32 %v1283, %v1372
      %v1389 = vadd.f32 %v1288, %v1373
      %v1390 = vadd.f32 %v1293, %v1374
      %v1391 = vadd.f32 %v1298, %v1375
      %v1392 = vadd.f32 %v1303, %v1376
      %v1393 = vadd.f32 %v1308, %v1377
      %v1394 = vadd.f32 %v1313, %v1378
      %v1395 = vadd.f32 %v1318, %v1379
      %v1396 = vadd.f32 %v1323, %v1380
      %v1397 = vadd.f32 %v1328, %v1381
      %v1398 = vadd.f32 %v1333, %v1382
      %v1399 = vadd.f32 %v1338, %v1383
      %v1400 = vadd.f32 %v1343, %v1384
      %vm1401 = vcmask 64512
      %1402 = vst.msk [vmem:[%s410] sm:$0xff] %vm1401, %v1385
      %1403 = vst.msk [vmem:[%s410 + $0x8] sm:$0xff] %vm1401, %v1386
      %1404 = vst.msk [vmem:[%s410 + $0x10] sm:$0xff] %vm1401, %v1387
      %1405 = vst.msk [vmem:[%s410 + $0x18] sm:$0xff] %vm1401, %v1388
      %1406 = vst.msk [vmem:[%s410 + $0x20] sm:$0xff] %vm1401, %v1389
      %1407 = vst.msk [vmem:[%s410 + $0x28] sm:$0xff] %vm1401, %v1390
      %1408 = vst.msk [vmem:[%s410 + $0x30] sm:$0xff] %vm1401, %v1391
      %1409 = vst.msk [vmem:[%s410 + $0x38] sm:$0xff] %vm1401, %v1392
      %1410 = vst.msk [vmem:[%s410 + $0x40] sm:$0xff] %vm1401, %v1393
      %1411 = vst.msk [vmem:[%s410 + $0x48] sm:$0xff] %vm1401, %v1394
      %1412 = vst.msk [vmem:[%s410 + $0x50] sm:$0xff] %vm1401, %v1395
      %1413 = vst.msk [vmem:[%s410 + $0x58] sm:$0xff] %vm1401, %v1396
      %1414 = vst.msk [vmem:[%s410 + $0x60] sm:$0xff] %vm1401, %v1397
      %1415 = vst.msk [vmem:[%s410 + $0x68] sm:$0xff] %vm1401, %v1398
      %1416 = vst.msk [vmem:[%s410 + $0x70] sm:$0xff] %vm1401, %v1399
      %1417 = vst.msk [vmem:[%s410 + $0x78] sm:$0xff] %vm1401, %v1400
      %s1418 = smul.u32 16, %s22
      %p1419 = scmp.lt.s32.totalorder %s1418, 31
      %s1420 = scalar_select %p1419, %s1418, 31
      %s1421 = smul.addr %s1420, 8
      %s1422 = scalar_lea.vmem %s11, %s1421
      // Predicated region
      $region65: #{ppo_actor_forward.1} parent=63 // pred_check
        %p1423 = pneg %p281
      $region66: #{ppo_actor_forward.1} parent=63 // pred_check_branch
        %1425 = sbr.rel (%p1423) target = $region68
      $region67: #{ppo_actor_forward.1} parent=63 // pred_region
        %s1426 = smul.u32 16, %s22
      $region68: #{ppo_actor_forward.1} parent=63 // pred_fallthru
        _
    $region64: #{ppo_actor_forward.1} parent=5 // pred_fallthru
      _
    %p1427 = scmp.le.s32.totalorder 2, %s17
    // Predicated region
    $region69: #{ppo_actor_forward.1} parent=5 // pred_check
      %p1428 = pneg %p1427
    $region70: #{ppo_actor_forward.1} parent=5 // pred_check_branch
      %1430 = sbr.rel (%p1428) target = $region72
    $region71: #{ppo_actor_forward.1} parent=5 // pred_region
      %s1431 = ssub.s32 %s17, 2
      // Predicated region
      $region73: #{ppo_actor_forward.1} parent=71 // pred_check
        %p1432 = pneg %p287
      $region74: #{ppo_actor_forward.1} parent=71 // pred_check_branch
        %1434 = sbr.rel (%p1432) target = $region76
      $region75: #{ppo_actor_forward.1} parent=71 // pred_region
        %s1435 = smul.u32 16, %s23
        %p1436 = scmp.lt.s32.totalorder %s1435, 31
        %s1437 = scalar_select %p1436, %s1435, 31
        %s1438 = smul.addr %s1437, 8
        %s1439 = scalar_lea.vmem %s11, %s1438
      $region76: #{ppo_actor_forward.1} parent=71 // pred_fallthru
        _
    $region72: #{ppo_actor_forward.1} parent=5 // pred_fallthru
      _
  $region6: #{ppo_actor_forward.1} parent=0 // loop_footer
    %s21 = sadd.s32 1, %s17
  $region7: #{ppo_actor_forward.1} parent=0 // loop_footer_branch
    %16 = sbr.rel target = $region3
  $region8: #{ppo_actor_forward.1} parent=0 // loop_exit
    _

</llo_original>
